<compile_context>
chip_gen: v5e
topology: v5e:2x2
jax: 0.10.0
libtpu: 0.0.40
codegen_flags: <defaults>
</compile_context>

<pallas_src>
import functools

import jax
import jax.numpy as jnp
from jax import lax
from jax.experimental import pallas as pl
from jax.experimental.pallas import tpu as pltpu

_BN_EPS = 1e-5


def _fused_block_kernel(x_ref, dww_ref, b1_ref, pww_ref, s2_ref, b2_ref, o_ref,
                        *, stride, matmul_dtype):
    """Fused DW-3x3-conv + BN1 + ReLU + PW-1x1-conv + BN2 + ReLU.

    Grid: (batch, output-row-tile); both axes are independent ("parallel").

    x_ref:   (Hp, Wp, C)     padded NHWC image of one batch element (resident
                             across the row-tile axis: index_map ignores t)
    dww_ref: (3, 3, C)       depthwise weights, BN1 scale pre-folded
    b1_ref:  (1, 1, C)       BN1 folded bias
    pww_ref: (C, Cout)       pointwise weights (possibly pre-cast to bf16)
    s2_ref:  (1, Cout)       BN2 folded scale
    b2_ref:  (1, Cout)       BN2 folded bias
    o_ref:   (TRO, Wo, Cout) final output row tile
    """
    tro, wo, cout = o_ref.shape
    c = x_ref.shape[-1]
    t = pl.program_id(1)
    row0 = t * (tro * stride)              # first padded input row of this tile

    # Hoist weight / bias loads out of the 3x3 tap loop.
    w = dww_ref[...].astype(jnp.float32)   # (3, 3, C)
    b1 = b1_ref[...].astype(jnp.float32)   # (1, 1, C)

    # Depthwise 3x3 conv; the stride is applied directly on the taps (strided
    # loads) so we only touch the rows/columns that survive the stride.
    acc = jnp.zeros((tro, wo, c), jnp.float32)
    for kh in range(3):
        if stride == 1:
            rows = pl.ds(row0 + kh, tro)
        else:
            rows = pl.ds(row0 + kh, tro, stride=stride)
        for kw in range(3):
            if stride == 1:
                cols = pl.ds(kw, wo)
            else:
                cols = pl.ds(kw, wo, stride=stride)
            tap = x_ref[rows, cols, :].astype(jnp.float32)        # (TRO, Wo, C)
            acc = acc + tap * w[kh:kh + 1, kw:kw + 1, :]
    h = jnp.maximum(acc + b1, 0.0)                                # (TRO, Wo, C)

    # Pointwise 1x1 conv as a single MXU matmul over channels; the intermediate
    # never leaves VMEM.  BN2 is a single fused multiply-add epilogue.
    h2 = h.reshape(tro * wo, c).astype(matmul_dtype)
    y = jnp.dot(h2, pww_ref[...], preferred_element_type=jnp.float32)
    y = y * s2_ref[...].astype(jnp.float32) + b2_ref[...].astype(jnp.float32)
    o_ref[...] = jnp.maximum(y, 0.0).reshape(tro, wo, cout).astype(o_ref.dtype)


def _pick_row_tile(ho, target):
    """Largest divisor of `ho` that is <= target (so the grid tiles evenly)."""
    t = max(1, min(target, ho))
    while ho % t:
        t -= 1
    return t


def init_block_params(key, in_planes, out_planes):
    k = jax.random.split(key, 8)
    return dict(
        # conv1 (depthwise): PyTorch weight (Cin, 1, 3, 3) stored as (3, 3, Cin)
        dw_w=0.2 * jax.random.normal(k[0], (3, 3, in_planes), jnp.float32),
        bn1_gamma=1.0 + 0.1 * jax.random.normal(k[1], (in_planes,), jnp.float32),
        bn1_beta=0.1 * jax.random.normal(k[2], (in_planes,), jnp.float32),
        bn1_mean=0.1 * jax.random.normal(k[3], (in_planes,), jnp.float32),
        bn1_var=1.0 + 0.1 * jnp.abs(jax.random.normal(k[4], (in_planes,), jnp.float32)),
        # conv2 (pointwise): PyTorch weight (Cout, Cin, 1, 1) stored as (Cin, Cout)
        pw_w=0.2 * jax.random.normal(k[5], (in_planes, out_planes), jnp.float32),
        bn2_gamma=1.0 + 0.1 * jax.random.normal(k[6], (out_planes,), jnp.float32),
        bn2_beta=0.1 * jax.random.normal(k[7], (out_planes,), jnp.float32),
        bn2_mean=jnp.zeros((out_planes,), jnp.float32),
        bn2_var=jnp.ones((out_planes,), jnp.float32),
    )


def block_forward(x_nchw, params, stride, *, row_tile=8, matmul_dtype=jnp.float32):
    """Forward pass of Block. Input/output are NCHW (PyTorch convention)."""
    x = jnp.transpose(x_nchw, (0, 2, 3, 1))          # -> NHWC (C on the lane dim)
    N, H, W, C = x.shape
    Cout = params['pw_w'].shape[1]

    # Inference-mode BN folded into per-channel scale/bias.
    # TODO(synk): training-mode BatchNorm (batch statistics) is not implemented.
    scale1 = params['bn1_gamma'] / jnp.sqrt(params['bn1_var'] + _BN_EPS)
    bias1 = params['bn1_beta'] - params['bn1_mean'] * scale1
    scale2 = params['bn2_gamma'] / jnp.sqrt(params['bn2_var'] + _BN_EPS)
    bias2 = params['bn2_beta'] - params['bn2_mean'] * scale2

    # Fold BN1 scale into the depthwise weights (host-side) so the kernel skips
    # one full-tile multiply per element.
    dww = params['dw_w'] * scale1[None, None, :]
    pww = params['pw_w'].astype(matmul_dtype)        # bf16 here -> MXU fast path

    Ho = (H - 1) // stride + 1                       # k=3, padding=1 output size
    Wo = (W - 1) // stride + 1

    # 'same' padding done once in glue; the kernel reads strided taps from it.
    xp = jnp.pad(x, ((0, 0), (1, 1), (1, 1), (0, 0)))
    Hp, Wp = H + 2, W + 2

    tro = _pick_row_tile(Ho, row_tile)               # output rows per grid step
    n_row_tiles = Ho // tro

    kernel = functools.partial(
        _fused_block_kernel, stride=stride, matmul_dtype=matmul_dtype)

    out = pl.pallas_call(
        kernel,
        out_shape=jax.ShapeDtypeStruct((N, Ho, Wo, Cout), x.dtype),
        grid=(N, n_row_tiles),
        in_specs=[
            # Full padded image per batch element; index_map ignores the row
            # tile axis so the block is DMA'd once per batch element and stays
            # resident across row tiles.
            pl.BlockSpec((None, Hp, Wp, C), lambda n, t: (n, 0, 0, 0)),
            pl.BlockSpec((3, 3, C), lambda n, t: (0, 0, 0)),
            pl.BlockSpec((1, 1, C), lambda n, t: (0, 0, 0)),
            pl.BlockSpec((C, Cout), lambda n, t: (0, 0)),
            pl.BlockSpec((1, Cout), lambda n, t: (0, 0)),
            pl.BlockSpec((1, Cout), lambda n, t: (0, 0)),
        ],
        out_specs=pl.BlockSpec((None, tro, Wo, Cout), lambda n, t: (n, t, 0, 0)),
        compiler_params=pltpu.CompilerParams(
            dimension_semantics=("parallel", "parallel")),
    )(xp, dww, bias1.reshape(1, 1, C), pww,
      scale2.reshape(1, Cout), bias2.reshape(1, Cout))

    return jnp.transpose(out, (0, 3, 1, 2))          # -> NCHW


def block_reference(x_nchw, params, stride):
    """Pure-JAX reference (same math, lax conv) for correctness checking."""
    x = jnp.transpose(x_nchw, (0, 2, 3, 1))
    C = x.shape[-1]
    dw = params['dw_w'].reshape(3, 3, 1, C)
    y = lax.conv_general_dilated(
        x, dw, window_strides=(stride, stride), padding=((1, 1), (1, 1)),
        dimension_numbers=('NHWC', 'HWIO', 'NHWC'), feature_group_count=C)
    scale1 = params['bn1_gamma'] / jnp.sqrt(params['bn1_var'] + _BN_EPS)
    bias1 = params['bn1_beta'] - params['bn1_mean'] * scale1
    y = jnp.maximum(y * scale1 + bias1, 0.0)
    y = jnp.einsum('nhwc,cd->nhwd', y, params['pw_w'])
    scale2 = params['bn2_gamma'] / jnp.sqrt(params['bn2_var'] + _BN_EPS)
    bias2 = params['bn2_beta'] - params['bn2_mean'] * scale2
    y = jnp.maximum(y * scale2 + bias2, 0.0)
    return jnp.transpose(y, (0, 3, 1, 2))


if __name__ == "__main__":
    key = jax.random.PRNGKey(0)
    k_x, k_p = jax.random.split(key)

    N, in_planes, out_planes, H, W = 2, 4, 8, 16, 16
    x = jax.random.normal(k_x, (N, in_planes, H, W), jnp.float32)  # NCHW
    params = init_block_params(k_p, in_planes, out_planes)

    # f32 matmul path: strict check against the pure-JAX reference.
    for stride in (2, 1):
        out = jax.block_until_ready(block_forward(x, params, stride, row_tile=4))
        ref = block_reference(x, params, stride)
        ho = (H - 1) // stride + 1
        wo = (W - 1) // stride + 1
        assert out.shape == (N, out_planes, ho, wo), out.shape
        assert jnp.allclose(out, ref, atol=1e-5, rtol=1e-5), \
            f"stride={stride} max abs err = {jnp.max(jnp.abs(out - ref))}"

    # bf16 MXU operands (v6e/v7x fast path); accumulation stays f32.
    out_bf16 = jax.block_until_ready(
        block_forward(x, params, 2, row_tile=4, matmul_dtype=jnp.bfloat16))
    ref2 = block_reference(x, params, 2)
    assert jnp.allclose(out_bf16, ref2, atol=3e-2, rtol=3e-2), \
        f"bf16 max abs err = {jnp.max(jnp.abs(out_bf16 - ref2))}"

    print("KERNEL_OK")
</pallas_src>

<mosaic_0001>
module attributes {stable_mosaic.version = 11 : i64} {
  func.func @_fused_block_kernel(%arg0: i32, %arg1: i32, %arg2: memref<1x18x18x4xf32, #tpu.memory_space<vmem>>, %arg3: memref<3x3x4xf32, #tpu.memory_space<vmem>>, %arg4: memref<1x1x4xf32, #tpu.memory_space<vmem>>, %arg5: memref<4x8xf32, #tpu.memory_space<vmem>>, %arg6: memref<1x8xf32, #tpu.memory_space<vmem>>, %arg7: memref<1x8xf32, #tpu.memory_space<vmem>>, %arg8: memref<1x4x8x8xf32, #tpu.memory_space<vmem>>) attributes {dimension_semantics = [#tpu.dimension_semantics<parallel>, #tpu.dimension_semantics<parallel>], iteration_bounds = array<i64: 2, 2>, scalar_prefetch = 0 : i64, scratch_operands = 0 : i64, tpu.core_type = #tpu.core_type<tc>, window_params = [{transform_indices = @transform_0, window_bounds = array<i64: 1, 18, 18, 4>}, {pipeline_mode = #tpu.pipeline_mode<synchronous>, transform_indices = @transform_1, window_bounds = array<i64: 3, 3, 4>}, {pipeline_mode = #tpu.pipeline_mode<synchronous>, transform_indices = @transform_2, window_bounds = array<i64: 1, 1, 4>}, {pipeline_mode = #tpu.pipeline_mode<synchronous>, transform_indices = @transform_3, window_bounds = array<i64: 4, 8>}, {pipeline_mode = #tpu.pipeline_mode<synchronous>, transform_indices = @transform_4, window_bounds = array<i64: 1, 8>}, {pipeline_mode = #tpu.pipeline_mode<synchronous>, transform_indices = @transform_5, window_bounds = array<i64: 1, 8>}, {transform_indices = @transform_6, window_bounds = array<i64: 1, 4, 8, 8>}]} {
    %c8_i32 = arith.constant 8 : i32
    %0 = arith.muli %arg1, %c8_i32 : i32
    %c0 = arith.constant 0 : index
    %c0_0 = arith.constant 0 : index
    %c0_1 = arith.constant 0 : index
    %1 = vector.load %arg3[%c0, %c0_0, %c0_1] : memref<3x3x4xf32, #tpu.memory_space<vmem>>, vector<3x3x4xf32>
    %c0_2 = arith.constant 0 : index
    %c0_3 = arith.constant 0 : index
    %c0_4 = arith.constant 0 : index
    %2 = vector.load %arg4[%c0_2, %c0_3, %c0_4] : memref<1x1x4xf32, #tpu.memory_space<vmem>>, vector<1x1x4xf32>
    %cst = arith.constant 0.000000e+00 : f32
    %3 = vector.broadcast %cst : f32 to vector<4x8x4xf32>
    %c0_i32 = arith.constant 0 : i32
    %4 = arith.addi %0, %c0_i32 : i32
    %c0_5 = arith.constant 0 : index
    %5 = arith.index_cast %4 : i32 to index
    %c0_6 = arith.constant 0 : index
    %c0_7 = arith.constant 0 : index
    %6 = tpu.strided_load %arg2[%c0_5, %5, %c0_6, %c0_7] {strides = array<i32: 1, 2, 2, 1>} : memref<1x18x18x4xf32, #tpu.memory_space<vmem>>, vector<1x4x8x4xf32>
    %7 = vector.shape_cast %6 : vector<1x4x8x4xf32> to vector<4x8x4xf32>
    %8 = vector.extract_strided_slice %1 {offsets = [0, 0, 0], sizes = [1, 1, 4], strides = [1, 1, 1]} : vector<3x3x4xf32> to vector<1x1x4xf32>
    %9 = vector.broadcast %8 : vector<1x1x4xf32> to vector<4x8x4xf32>
    %10 = arith.mulf %7, %9 : vector<4x8x4xf32>
    %11 = arith.addf %3, %10 : vector<4x8x4xf32>
    %c0_8 = arith.constant 0 : index
    %12 = arith.index_cast %4 : i32 to index
    %c1 = arith.constant 1 : index
    %c0_9 = arith.constant 0 : index
    %13 = tpu.strided_load %arg2[%c0_8, %12, %c1, %c0_9] {strides = array<i32: 1, 2, 2, 1>} : memref<1x18x18x4xf32, #tpu.memory_space<vmem>>, vector<1x4x8x4xf32>
    %14 = vector.shape_cast %13 : vector<1x4x8x4xf32> to vector<4x8x4xf32>
    %15 = vector.extract_strided_slice %1 {offsets = [0, 1, 0], sizes = [1, 1, 4], strides = [1, 1, 1]} : vector<3x3x4xf32> to vector<1x1x4xf32>
    %16 = vector.broadcast %15 : vector<1x1x4xf32> to vector<4x8x4xf32>
    %17 = arith.mulf %14, %16 : vector<4x8x4xf32>
    %18 = arith.addf %11, %17 : vector<4x8x4xf32>
    %c0_10 = arith.constant 0 : index
    %19 = arith.index_cast %4 : i32 to index
    %c2 = arith.constant 2 : index
    %c0_11 = arith.constant 0 : index
    %20 = tpu.strided_load %arg2[%c0_10, %19, %c2, %c0_11] {strides = array<i32: 1, 2, 2, 1>} : memref<1x18x18x4xf32, #tpu.memory_space<vmem>>, vector<1x4x8x4xf32>
    %21 = vector.shape_cast %20 : vector<1x4x8x4xf32> to vector<4x8x4xf32>
    %22 = vector.extract_strided_slice %1 {offsets = [0, 2, 0], sizes = [1, 1, 4], strides = [1, 1, 1]} : vector<3x3x4xf32> to vector<1x1x4xf32>
    %23 = vector.broadcast %22 : vector<1x1x4xf32> to vector<4x8x4xf32>
    %24 = arith.mulf %21, %23 : vector<4x8x4xf32>
    %25 = arith.addf %18, %24 : vector<4x8x4xf32>
    %c1_i32 = arith.constant 1 : i32
    %26 = arith.addi %0, %c1_i32 : i32
    %c0_12 = arith.constant 0 : index
    %27 = arith.index_cast %26 : i32 to index
    %c0_13 = arith.constant 0 : index
    %c0_14 = arith.constant 0 : index
    %28 = tpu.strided_load %arg2[%c0_12, %27, %c0_13, %c0_14] {strides = array<i32: 1, 2, 2, 1>} : memref<1x18x18x4xf32, #tpu.memory_space<vmem>>, vector<1x4x8x4xf32>
    %29 = vector.shape_cast %28 : vector<1x4x8x4xf32> to vector<4x8x4xf32>
    %30 = vector.extract_strided_slice %1 {offsets = [1, 0, 0], sizes = [1, 1, 4], strides = [1, 1, 1]} : vector<3x3x4xf32> to vector<1x1x4xf32>
    %31 = vector.broadcast %30 : vector<1x1x4xf32> to vector<4x8x4xf32>
    %32 = arith.mulf %29, %31 : vector<4x8x4xf32>
    %33 = arith.addf %25, %32 : vector<4x8x4xf32>
    %c0_15 = arith.constant 0 : index
    %34 = arith.index_cast %26 : i32 to index
    %c1_16 = arith.constant 1 : index
    %c0_17 = arith.constant 0 : index
    %35 = tpu.strided_load %arg2[%c0_15, %34, %c1_16, %c0_17] {strides = array<i32: 1, 2, 2, 1>} : memref<1x18x18x4xf32, #tpu.memory_space<vmem>>, vector<1x4x8x4xf32>
    %36 = vector.shape_cast %35 : vector<1x4x8x4xf32> to vector<4x8x4xf32>
    %37 = vector.extract_strided_slice %1 {offsets = [1, 1, 0], sizes = [1, 1, 4], strides = [1, 1, 1]} : vector<3x3x4xf32> to vector<1x1x4xf32>
    %38 = vector.broadcast %37 : vector<1x1x4xf32> to vector<4x8x4xf32>
    %39 = arith.mulf %36, %38 : vector<4x8x4xf32>
    %40 = arith.addf %33, %39 : vector<4x8x4xf32>
    %c0_18 = arith.constant 0 : index
    %41 = arith.index_cast %26 : i32 to index
    %c2_19 = arith.constant 2 : index
    %c0_20 = arith.constant 0 : index
    %42 = tpu.strided_load %arg2[%c0_18, %41, %c2_19, %c0_20] {strides = array<i32: 1, 2, 2, 1>} : memref<1x18x18x4xf32, #tpu.memory_space<vmem>>, vector<1x4x8x4xf32>
    %43 = vector.shape_cast %42 : vector<1x4x8x4xf32> to vector<4x8x4xf32>
    %44 = vector.extract_strided_slice %1 {offsets = [1, 2, 0], sizes = [1, 1, 4], strides = [1, 1, 1]} : vector<3x3x4xf32> to vector<1x1x4xf32>
    %45 = vector.broadcast %44 : vector<1x1x4xf32> to vector<4x8x4xf32>
    %46 = arith.mulf %43, %45 : vector<4x8x4xf32>
    %47 = arith.addf %40, %46 : vector<4x8x4xf32>
    %c2_i32 = arith.constant 2 : i32
    %48 = arith.addi %0, %c2_i32 : i32
    %c0_21 = arith.constant 0 : index
    %49 = arith.index_cast %48 : i32 to index
    %c0_22 = arith.constant 0 : index
    %c0_23 = arith.constant 0 : index
    %50 = tpu.strided_load %arg2[%c0_21, %49, %c0_22, %c0_23] {strides = array<i32: 1, 2, 2, 1>} : memref<1x18x18x4xf32, #tpu.memory_space<vmem>>, vector<1x4x8x4xf32>
    %51 = vector.shape_cast %50 : vector<1x4x8x4xf32> to vector<4x8x4xf32>
    %52 = vector.extract_strided_slice %1 {offsets = [2, 0, 0], sizes = [1, 1, 4], strides = [1, 1, 1]} : vector<3x3x4xf32> to vector<1x1x4xf32>
    %53 = vector.broadcast %52 : vector<1x1x4xf32> to vector<4x8x4xf32>
    %54 = arith.mulf %51, %53 : vector<4x8x4xf32>
    %55 = arith.addf %47, %54 : vector<4x8x4xf32>
    %c0_24 = arith.constant 0 : index
    %56 = arith.index_cast %48 : i32 to index
    %c1_25 = arith.constant 1 : index
    %c0_26 = arith.constant 0 : index
    %57 = tpu.strided_load %arg2[%c0_24, %56, %c1_25, %c0_26] {strides = array<i32: 1, 2, 2, 1>} : memref<1x18x18x4xf32, #tpu.memory_space<vmem>>, vector<1x4x8x4xf32>
    %58 = vector.shape_cast %57 : vector<1x4x8x4xf32> to vector<4x8x4xf32>
    %59 = vector.extract_strided_slice %1 {offsets = [2, 1, 0], sizes = [1, 1, 4], strides = [1, 1, 1]} : vector<3x3x4xf32> to vector<1x1x4xf32>
    %60 = vector.broadcast %59 : vector<1x1x4xf32> to vector<4x8x4xf32>
    %61 = arith.mulf %58, %60 : vector<4x8x4xf32>
    %62 = arith.addf %55, %61 : vector<4x8x4xf32>
    %c0_27 = arith.constant 0 : index
    %63 = arith.index_cast %48 : i32 to index
    %c2_28 = arith.constant 2 : index
    %c0_29 = arith.constant 0 : index
    %64 = tpu.strided_load %arg2[%c0_27, %63, %c2_28, %c0_29] {strides = array<i32: 1, 2, 2, 1>} : memref<1x18x18x4xf32, #tpu.memory_space<vmem>>, vector<1x4x8x4xf32>
    %65 = vector.shape_cast %64 : vector<1x4x8x4xf32> to vector<4x8x4xf32>
    %66 = vector.extract_strided_slice %1 {offsets = [2, 2, 0], sizes = [1, 1, 4], strides = [1, 1, 1]} : vector<3x3x4xf32> to vector<1x1x4xf32>
    %67 = vector.broadcast %66 : vector<1x1x4xf32> to vector<4x8x4xf32>
    %68 = arith.mulf %65, %67 : vector<4x8x4xf32>
    %69 = arith.addf %62, %68 : vector<4x8x4xf32>
    %70 = vector.broadcast %2 : vector<1x1x4xf32> to vector<4x8x4xf32>
    %71 = arith.addf %69, %70 : vector<4x8x4xf32>
    %cst_30 = arith.constant 0.000000e+00 : f32
    %72 = vector.broadcast %cst_30 : f32 to vector<4x8x4xf32>
    %73 = arith.maximumf %71, %72 : vector<4x8x4xf32>
    %74 = vector.shape_cast %73 : vector<4x8x4xf32> to vector<32x4xf32>
    %c0_31 = arith.constant 0 : index
    %c0_32 = arith.constant 0 : index
    %75 = vector.load %arg5[%c0_31, %c0_32] : memref<4x8xf32, #tpu.memory_space<vmem>>, vector<4x8xf32>
    %cst_33 = arith.constant dense<0.000000e+00> : vector<32x8xf32>
    %76 = tpu.matmul %74, %75, %cst_33 {dimension_numbers = #tpu.dot_dimension_numbers<[1], [0], [0], [1], [0, 0, 1, 1], [], []>} : vector<32x4xf32>, vector<4x8xf32>, vector<32x8xf32> -> vector<32x8xf32>
    %c0_34 = arith.constant 0 : index
    %c0_35 = arith.constant 0 : index
    %77 = vector.load %arg6[%c0_34, %c0_35] : memref<1x8xf32, #tpu.memory_space<vmem>>, vector<1x8xf32>
    %78 = vector.broadcast %77 : vector<1x8xf32> to vector<32x8xf32>
    %79 = arith.mulf %76, %78 : vector<32x8xf32>
    %c0_36 = arith.constant 0 : index
    %c0_37 = arith.constant 0 : index
    %80 = vector.load %arg7[%c0_36, %c0_37] : memref<1x8xf32, #tpu.memory_space<vmem>>, vector<1x8xf32>
    %81 = vector.broadcast %80 : vector<1x8xf32> to vector<32x8xf32>
    %82 = arith.addf %79, %81 : vector<32x8xf32>
    %cst_38 = arith.constant 0.000000e+00 : f32
    %83 = vector.broadcast %cst_38 : f32 to vector<32x8xf32>
    %84 = arith.maximumf %82, %83 : vector<32x8xf32>
    %85 = vector.shape_cast %84 : vector<32x8xf32> to vector<4x8x8xf32>
    %c0_39 = arith.constant 0 : index
    %c0_40 = arith.constant 0 : index
    %c0_41 = arith.constant 0 : index
    %c0_42 = arith.constant 0 : index
    %86 = vector.load %arg8[%c0_39, %c0_40, %c0_41, %c0_42] : memref<1x4x8x8xf32, #tpu.memory_space<vmem>>, vector<1x4x8x8xf32>
    %87 = vector.shape_cast %86 : vector<1x4x8x8xf32> to vector<4x8x8xf32>
    %88 = vector.shape_cast %85 : vector<4x8x8xf32> to vector<1x4x8x8xf32>
    tpu.vector_store %arg8[%c0_39, %c0_40, %c0_41, %c0_42], %88 {strides = array<i32>} : memref<1x4x8x8xf32, #tpu.memory_space<vmem>>, vector<1x4x8x8xf32>,
    return
  }
  func.func @transform_0(%arg0: i32, %arg1: i32) -> (i32, i32, i32, i32) {
    %c0_i32 = arith.constant 0 : i32
    %c0_i32_0 = arith.constant 0 : i32
    %c0_i32_1 = arith.constant 0 : i32
    %c0_i32_2 = arith.constant 0 : i32
    return %arg0, %c0_i32, %c0_i32_0, %c0_i32_1 : i32, i32, i32, i32
  }
  func.func @transform_1(%arg0: i32, %arg1: i32) -> (i32, i32, i32) {
    %c0_i32 = arith.constant 0 : i32
    %c0_i32_0 = arith.constant 0 : i32
    %c0_i32_1 = arith.constant 0 : i32
    %c0_i32_2 = arith.constant 0 : i32
    return %c0_i32, %c0_i32_0, %c0_i32_1 : i32, i32, i32
  }
  func.func @transform_2(%arg0: i32, %arg1: i32) -> (i32, i32, i32) {
    %c0_i32 = arith.constant 0 : i32
    %c0_i32_0 = arith.constant 0 : i32
    %c0_i32_1 = arith.constant 0 : i32
    %c0_i32_2 = arith.constant 0 : i32
    return %c0_i32, %c0_i32_0, %c0_i32_1 : i32, i32, i32
  }
  func.func @transform_3(%arg0: i32, %arg1: i32) -> (i32, i32) {
    %c0_i32 = arith.constant 0 : i32
    %c0_i32_0 = arith.constant 0 : i32
    %c0_i32_1 = arith.constant 0 : i32
    return %c0_i32, %c0_i32_0 : i32, i32
  }
  func.func @transform_4(%arg0: i32, %arg1: i32) -> (i32, i32) {
    %c0_i32 = arith.constant 0 : i32
    %c0_i32_0 = arith.constant 0 : i32
    %c0_i32_1 = arith.constant 0 : i32
    return %c0_i32, %c0_i32_0 : i32, i32
  }
  func.func @transform_5(%arg0: i32, %arg1: i32) -> (i32, i32) {
    %c0_i32 = arith.constant 0 : i32
    %c0_i32_0 = arith.constant 0 : i32
    %c0_i32_1 = arith.constant 0 : i32
    return %c0_i32, %c0_i32_0 : i32, i32
  }
  func.func @transform_6(%arg0: i32, %arg1: i32) -> (i32, i32, i32, i32) {
    %c0_i32 = arith.constant 0 : i32
    %c0_i32_0 = arith.constant 0 : i32
    %c0_i32_1 = arith.constant 0 : i32
    return %arg0, %arg1, %c0_i32, %c0_i32_0 : i32, i32, i32, i32
  }
}

</mosaic_0001>

<llo_original>
// kernel: tpu_custom_call.1
$region0: #{tpu_custom_call.1}
  #allocation0 [shape = 'u32[]', space=smem, size = 0x4, offset = 0x4, fixed_abs, tag = 'smem constant byte address 0x4 - core index']
  #allocation1 [shape = 'u32[72,128]{1,0:T(1,128)}', space=vmem, size = 0x9000, scoped, tag = 'internal scratch']
  %s0 = inlined_call_operand.vmem [shape: f32[2,18,18,4], index: 0, kind: input, shape index: {}]
  %s1 = inlined_call_operand.vmem [shape: f32[3,3,4], index: 1, kind: input, shape index: {}]
  %s2 = inlined_call_operand.vmem [shape: f32[1,1,4], index: 2, kind: input, shape index: {}]
  %s3 = inlined_call_operand.vmem [shape: f32[4,8], index: 3, kind: input, shape index: {}]
  %s4 = inlined_call_operand.vmem [shape: f32[1,8], index: 4, kind: input, shape index: {}]
  %s5 = inlined_call_operand.vmem [shape: f32[1,8], index: 5, kind: input, shape index: {}]
  %s6 = inlined_call_operand.hbm [shape: f32[2,8,8,8], index: 6, kind: output, shape index: {}]
  %s7 = sld [smem:[#allocation0]]
  $region57: #{tpu_custom_call.1} parent=0
    _
  %s9 = ssub.s32 1, %s7
  %s10 = scalar_select 0, %s9, %s7
  $region1: #{tpu_custom_call.1} parent=0
    #allocation2 [shape = 'u8[32768]{0}', space=vmem, size = 0x8000, scoped, tag = 'output window, operand 0']
    #allocation3 [shape = 's32[2]{0}', space=sflag, size = 0x8, scoped, tag = 'scoped memory for tpu_custom_call.1']
    %11 = vsyncpa [#allocation3], 0
    %s12 = scalar_lea.sflag [#allocation3], 1
    %13 = vsyncpa %s12, 0
    loop: start=0, step=1, limit=6
    $region2: #{tpu_custom_call.1} parent=1 // loop_pre_header
      _
    $region3: #{tpu_custom_call.1} parent=1 // loop_header
      %s15 = sphi 0, %s19
      %p16 = scmp.ge.s32.totalorder %s15, 6
      %s22 = sphi 0, %s34
      %s23 = sphi 0, %s30
      %s24 = sphi 0, %s22
      %s25 = sphi 0, %s23
      %s26 = sphi 0, %s24
      %s27 = sphi 0, %s25
      %s37 = sphi 0, %s39
      %s40 = sphi 0, %s37
      %s41 = sphi 0, %s40
      %s57 = sphi 0, %s41
      %s61 = sphi 0, %s61
      %s63 = sphi 0, %s61
      %s64 = sphi 0, %s63
      %s78 = sphi 0, %s64
      %s82 = sphi 0, %s82
      %s84 = sphi 0, %s82
      %s85 = sphi 0, %s84
      %s99 = sphi 0, %s85
      %s103 = sphi 0, %s103
      %s105 = sphi 0, %s103
      %s106 = sphi 0, %s105
      %s120 = sphi 0, %s106
      %s124 = sphi 0, %s124
      %s126 = sphi 0, %s124
      %s127 = sphi 0, %s126
      %s141 = sphi 0, %s127
      %s145 = sphi 0, %s145
      %s147 = sphi 0, %s145
      %s148 = sphi 0, %s147
      %s162 = sphi 0, %s148
      %s170 = sphi 0, %s172
      %s173 = sphi 0, %s170
      %s174 = sphi 0, %s173
      %s190 = sphi 0, %s174
    $region4: #{tpu_custom_call.1} parent=1 // loop_header_branch
      %18 = sbr.rel (%p16) target = $region8
    $region5: #{tpu_custom_call.1} parent=1 // loop_body
      %s20 = ssub.s32 %s15, 1
      %s21 = ssub.s32 %s15, 2
      %s28 = sadd.s32 1, %s23
      %p29 = scmp.ge.s32.totalorder %s28, 2
      %s30 = scalar_select %p29, 0, %s28
      %s31 = sadd.s32 1, %s22
      %s32 = scalar_select %p29, %s31, %s22
      %p33 = scmp.ge.s32.totalorder %s32, 2
      %s34 = scalar_select %p33, 0, %s32
      %s35 = ssub.s32 %s22, %s34
      %p36 = scmp.eq.s32.totalorder %s35, 0
      %s38 = sadd.s32 %s37, 1
      %s39 = scalar_select %p36, %s37, %s38
      %p42 = pneg %p36
      %p43 = scmp.eq.s32.totalorder %s15, 3
      %p44 = por %p42, %p43
      %p45 = scmp.ne.s32.totalorder %s37, %s40
      %p46 = scmp.eq.s32.totalorder %s15, 0
      %p47 = por %p45, %p46
      %p48 = scmp.ne.s32.totalorder %s37, %s40
      %p49 = scmp.eq.s32.totalorder %s20, 3
      %p50 = por %p48, %p49
      %p51 = scmp.ne.s32.totalorder %s40, %s41
      %p52 = scmp.eq.s32.totalorder %s20, 0
      %p53 = por %p51, %p52
      %p54 = scmp.ne.s32.totalorder %s40, %s41
      %p55 = scmp.eq.s32.totalorder %s21, 3
      %p56 = por %p54, %p55
      %p58 = scmp.ne.s32.totalorder %s41, %s57
      %p59 = scmp.eq.s32.totalorder %s21, 0
      %p60 = por %p58, %p59
      %s62 = sadd.s32 %s61, 1
      %p65 = scmp.eq.s32.totalorder %s15, 3
      %p66 = scmp.ne.s32.totalorder %s61, %s63
      %p67 = scmp.eq.s32.totalorder %s15, 0
      %p68 = por %p66, %p67
      %p69 = scmp.ne.s32.totalorder %s61, %s63
      %p70 = scmp.eq.s32.totalorder %s20, 3
      %p71 = por %p69, %p70
      %p72 = scmp.ne.s32.totalorder %s63, %s64
      %p73 = scmp.eq.s32.totalorder %s20, 0
      %p74 = por %p72, %p73
      %p75 = scmp.ne.s32.totalorder %s63, %s64
      %p76 = scmp.eq.s32.totalorder %s21, 3
      %p77 = por %p75, %p76
      %p79 = scmp.ne.s32.totalorder %s64, %s78
      %p80 = scmp.eq.s32.totalorder %s21, 0
      %p81 = por %p79, %p80
      %s83 = sadd.s32 %s82, 1
      %p86 = scmp.eq.s32.totalorder %s15, 3
      %p87 = scmp.ne.s32.totalorder %s82, %s84
      %p88 = scmp.eq.s32.totalorder %s15, 0
      %p89 = por %p87, %p88
      %p90 = scmp.ne.s32.totalorder %s82, %s84
      %p91 = scmp.eq.s32.totalorder %s20, 3
      %p92 = por %p90, %p91
      %p93 = scmp.ne.s32.totalorder %s84, %s85
      %p94 = scmp.eq.s32.totalorder %s20, 0
      %p95 = por %p93, %p94
      %p96 = scmp.ne.s32.totalorder %s84, %s85
      %p97 = scmp.eq.s32.totalorder %s21, 3
      %p98 = por %p96, %p97
      %p100 = scmp.ne.s32.totalorder %s85, %s99
      %p101 = scmp.eq.s32.totalorder %s21, 0
      %p102 = por %p100, %p101
      %s104 = sadd.s32 %s103, 1
      %p107 = scmp.eq.s32.totalorder %s15, 3
      %p108 = scmp.ne.s32.totalorder %s103, %s105
      %p109 = scmp.eq.s32.totalorder %s15, 0
      %p110 = por %p108, %p109
      %p111 = scmp.ne.s32.totalorder %s103, %s105
      %p112 = scmp.eq.s32.totalorder %s20, 3
      %p113 = por %p111, %p112
      %p114 = scmp.ne.s32.totalorder %s105, %s106
      %p115 = scmp.eq.s32.totalorder %s20, 0
      %p116 = por %p114, %p115
      %p117 = scmp.ne.s32.totalorder %s105, %s106
      %p118 = scmp.eq.s32.totalorder %s21, 3
      %p119 = por %p117, %p118
      %p121 = scmp.ne.s32.totalorder %s106, %s120
      %p122 = scmp.eq.s32.totalorder %s21, 0
      %p123 = por %p121, %p122
      %s125 = sadd.s32 %s124, 1
      %p128 = scmp.eq.s32.totalorder %s15, 3
      %p129 = scmp.ne.s32.totalorder %s124, %s126
      %p130 = scmp.eq.s32.totalorder %s15, 0
      %p131 = por %p129, %p130
      %p132 = scmp.ne.s32.totalorder %s124, %s126
      %p133 = scmp.eq.s32.totalorder %s20, 3
      %p134 = por %p132, %p133
      %p135 = scmp.ne.s32.totalorder %s126, %s127
      %p136 = scmp.eq.s32.totalorder %s20, 0
      %p137 = por %p135, %p136
      %p138 = scmp.ne.s32.totalorder %s126, %s127
      %p139 = scmp.eq.s32.totalorder %s21, 3
      %p140 = por %p138, %p139
      %p142 = scmp.ne.s32.totalorder %s127, %s141
      %p143 = scmp.eq.s32.totalorder %s21, 0
      %p144 = por %p142, %p143
      %s146 = sadd.s32 %s145, 1
      %p149 = scmp.eq.s32.totalorder %s15, 3
      %p150 = scmp.ne.s32.totalorder %s145, %s147
      %p151 = scmp.eq.s32.totalorder %s15, 0
      %p152 = por %p150, %p151
      %p153 = scmp.ne.s32.totalorder %s145, %s147
      %p154 = scmp.eq.s32.totalorder %s20, 3
      %p155 = por %p153, %p154
      %p156 = scmp.ne.s32.totalorder %s147, %s148
      %p157 = scmp.eq.s32.totalorder %s20, 0
      %p158 = por %p156, %p157
      %p159 = scmp.ne.s32.totalorder %s147, %s148
      %p160 = scmp.eq.s32.totalorder %s21, 3
      %p161 = por %p159, %p160
      %p163 = scmp.ne.s32.totalorder %s148, %s162
      %p164 = scmp.eq.s32.totalorder %s21, 0
      %p165 = por %p163, %p164
      %s166 = ssub.s32 %s22, %s34
      %s167 = ssub.s32 %s23, %s30
      %s168 = sor.u32 %s166, %s167
      %p169 = scmp.eq.s32.totalorder %s168, 0
      %s171 = sadd.s32 %s170, 1
      %s172 = scalar_select %p169, %s170, %s171
      %p175 = pneg %p169
      %p176 = scmp.eq.s32.totalorder %s15, 3
      %p177 = por %p175, %p176
      %p178 = scmp.ne.s32.totalorder %s170, %s173
      %p179 = scmp.eq.s32.totalorder %s15, 0
      %p180 = por %p178, %p179
      %p181 = scmp.ne.s32.totalorder %s170, %s173
      %p182 = scmp.eq.s32.totalorder %s20, 3
      %p183 = por %p181, %p182
      %p184 = scmp.ne.s32.totalorder %s173, %s174
      %p185 = scmp.eq.s32.totalorder %s20, 0
      %p186 = por %p184, %p185
      %p187 = scmp.ne.s32.totalorder %s173, %s174
      %p188 = scmp.eq.s32.totalorder %s21, 3
      %p189 = por %p187, %p188
      %p191 = scmp.ne.s32.totalorder %s174, %s190
      %p192 = scmp.eq.s32.totalorder %s21, 0
      %p193 = por %p191, %p192
      %p194 = scmp.le.s32.totalorder 1, %s15
      %p195 = scmp.lt.s32.totalorder %s15, 5
      %p196 = pnand %p194, %p195
      %p197 = pneg %p196
      // Predicated region
      $region9: #{tpu_custom_call.1} parent=5 // pred_check
        _
      $region10: #{tpu_custom_call.1} parent=5 // pred_check_branch
        %199 = sbr.rel (%p196) target = $region12
      $region11: #{tpu_custom_call.1} parent=5 // pred_region
        %s200 = ssub.s32 %s15, 1
        // Predicated region
        $region13: #{tpu_custom_call.1} parent=11 // pred_check
          %p201 = pneg %p74
        $region14: #{tpu_custom_call.1} parent=11 // pred_check_branch
          %203 = sbr.rel (%p201) target = $region16
        $region15: #{tpu_custom_call.1} parent=11 // pred_region
          _
        $region16: #{tpu_custom_call.1} parent=11 // pred_fallthru
          _
        // Predicated region
        $region17: #{tpu_custom_call.1} parent=11 // pred_check
          %p204 = pneg %p95
        $region18: #{tpu_custom_call.1} parent=11 // pred_check_branch
          %206 = sbr.rel (%p204) target = $region20
        $region19: #{tpu_custom_call.1} parent=11 // pred_region
          _
        $region20: #{tpu_custom_call.1} parent=11 // pred_fallthru
          _
        // Predicated region
        $region21: #{tpu_custom_call.1} parent=11 // pred_check
          %p207 = pneg %p116
        $region22: #{tpu_custom_call.1} parent=11 // pred_check_branch
          %209 = sbr.rel (%p207) target = $region24
        $region23: #{tpu_custom_call.1} parent=11 // pred_region
          _
        $region24: #{tpu_custom_call.1} parent=11 // pred_fallthru
          _
        // Predicated region
        $region25: #{tpu_custom_call.1} parent=11 // pred_check
          %p210 = pneg %p137
        $region26: #{tpu_custom_call.1} parent=11 // pred_check_branch
          %212 = sbr.rel (%p210) target = $region28
        $region27: #{tpu_custom_call.1} parent=11 // pred_region
          _
        $region28: #{tpu_custom_call.1} parent=11 // pred_fallthru
          _
        // Predicated region
        $region29: #{tpu_custom_call.1} parent=11 // pred_check
          %p213 = pneg %p158
        $region30: #{tpu_custom_call.1} parent=11 // pred_check_branch
          %215 = sbr.rel (%p213) target = $region32
        $region31: #{tpu_custom_call.1} parent=11 // pred_region
          _
        $region32: #{tpu_custom_call.1} parent=11 // pred_fallthru
          _
      $region12: #{tpu_custom_call.1} parent=5 // pred_fallthru
        _
      %p216 = scmp.lt.s32.totalorder %s15, 4
      // Predicated region
      $region33: #{tpu_custom_call.1} parent=5 // pred_check
        %p217 = pneg %p216
      $region34: #{tpu_custom_call.1} parent=5 // pred_check_branch
        %219 = sbr.rel (%p217) target = $region36
      $region35: #{tpu_custom_call.1} parent=5 // pred_region
        // Predicated region
        $region37: #{tpu_custom_call.1} parent=35 // pred_check
          %p220 = pneg %p47
        $region38: #{tpu_custom_call.1} parent=35 // pred_check_branch
          %222 = sbr.rel (%p220) target = $region40
        $region39: #{tpu_custom_call.1} parent=35 // pred_region
          %p223 = scmp.lt.s32.totalorder %s22, 1
          %s224 = scalar_select %p223, %s22, 1
          %s225 = smul.addr %s224, 54
          %s226 = smul.addr %s225, 8
          %s227 = scalar_lea.vmem %s0, %s226
        $region40: #{tpu_custom_call.1} parent=35 // pred_fallthru
          _
      $region36: #{tpu_custom_call.1} parent=5 // pred_fallthru
        _
      %p228 = scmp.le.s32.totalorder 1, %s15
      %p229 = scmp.lt.s32.totalorder %s15, 5
      %p230 = pnand %p228, %p229
      %p231 = pneg %p230
      // Predicated region
      $region41: #{tpu_custom_call.1} parent=5 // pred_check
        _
      $region42: #{tpu_custom_call.1} parent=5 // pred_check_branch
        %233 = sbr.rel (%p230) target = $region44
      $region43: #{tpu_custom_call.1} parent=5 // pred_region
        %s234 = ssub.s32 %s15, 1
        %p235 = scmp.lt.s32.totalorder %s24, 1
        %s236 = scalar_select %p235, %s24, 1
        %s237 = smul.addr %s236, 54
        %s238 = smul.addr %s237, 8
        %s239 = scalar_lea.vmem %s0, %s238
        %p240 = pneg %p53
        %p241 = pneg %p50
        %p242 = pneg %p74
        %p243 = pneg %p71
        %p244 = pneg %p95
        %p245 = pneg %p92
        %p246 = pneg %p116
        %p247 = pneg %p113
        %p248 = pneg %p137
        %p249 = pneg %p134
        %p250 = pneg %p158
        %p251 = pneg %p155
        %p252 = pneg %p186
        %p253 = pneg %p183
        %s254 = sand.u32 %s173, 1
        %s255 = scalar_lea.sflag [#allocation3], %s254
        %s256 = sand.u32 %s173, 1
        %s257 = smul.addr %s256, 32
        %s258 = scalar_lea.vmem [#allocation2], %s257
        %p259 = scmp.lt.s32.totalorder %s24, 1
        %s260 = scalar_select %p259, %s24, 1
        %s261 = smul.addr %s260, 54
        %s262 = smul.addr %s261, 8
        %s263 = scalar_lea.vmem %s0, %s262
        %s264 = smul.u32 4, %s25
        %s265 = smul.u32 %s25, 8
        %v266 = vld [vmem:[%s1] sm:$0x7]
        %v267 = vld [vmem:[%s1 + $0x4] sm:$0x7]
        %v268 = vld [vmem:[%s1 + $0x8] sm:$0x7]
        %v269 = vld [vmem:[%s2] sm:$0x1]
        %s270 = smul.u32 %s265, 24
        %s271 = scalar_lea.vmem %s263, %s270
        %v272 = vld [vmem:[%s271] ss:$2 sm:$0xff]
        %s273 = scalar_lea.vmem %s271, 48
        %v274 = vld [vmem:[%s273] ss:$2 sm:$0xff]
        %s275 = scalar_lea.vmem %s271, 96
        %v276 = vld [vmem:[%s275] ss:$2 sm:$0xff]
        %s277 = scalar_lea.vmem %s271, 144
        %v278 = vld [vmem:[%s277] ss:$2 sm:$0xff]
        %v279 = vperm.slane %v266, 0
        %v280 = vmul.f32 %v272, %v279
        %v281 = vmul.f32 %v274, %v279
        %v282 = vmul.f32 %v276, %v279
        %v283 = vmul.f32 %v278, %v279
        %v284 = vadd.f32 %v280, 0.0
        %v285 = vadd.f32 %v281, 0.0
        %v286 = vadd.f32 %v282, 0.0
        %v287 = vadd.f32 %v283, 0.0
        %s288 = scalar_lea.vmem %s271, 1
        %v289 = vld [vmem:[%s288] ss:$2 sm:$0xff]
        %s290 = scalar_lea.vmem %s271, 49
        %v291 = vld [vmem:[%s290] ss:$2 sm:$0xff]
        %s292 = scalar_lea.vmem %s271, 97
        %v293 = vld [vmem:[%s292] ss:$2 sm:$0xff]
        %s294 = scalar_lea.vmem %s271, 145
        %v295 = vld [vmem:[%s294] ss:$2 sm:$0xff]
        %v296 = vperm.slane %v266, 1
        %v297 = vmul.f32 %v289, %v296
        %v298 = vmul.f32 %v291, %v296
        %v299 = vmul.f32 %v293, %v296
        %v300 = vmul.f32 %v295, %v296
        %v301 = vadd.f32 %v284, %v297
        %v302 = vadd.f32 %v285, %v298
        %v303 = vadd.f32 %v286, %v299
        %v304 = vadd.f32 %v287, %v300
        %s305 = scalar_lea.vmem %s271, 2
        %v306 = vld [vmem:[%s305] ss:$2 sm:$0xff]
        %s307 = scalar_lea.vmem %s271, 50
        %v308 = vld [vmem:[%s307] ss:$2 sm:$0xff]
        %s309 = scalar_lea.vmem %s271, 98
        %v310 = vld [vmem:[%s309] ss:$2 sm:$0xff]
        %s311 = scalar_lea.vmem %s271, 146
        %v312 = vld [vmem:[%s311] ss:$2 sm:$0xff]
        %v313 = vperm.slane %v266, 2
        %v314 = vmul.f32 %v306, %v313
        %v315 = vmul.f32 %v308, %v313
        %v316 = vmul.f32 %v310, %v313
        %v317 = vmul.f32 %v312, %v313
        %v318 = vadd.f32 %v301, %v314
        %v319 = vadd.f32 %v302, %v315
        %v320 = vadd.f32 %v303, %v316
        %v321 = vadd.f32 %v304, %v317
        %s322 = sadd.s32 %s265, 1
        %s323 = smul.u32 %s322, 24
        %s324 = scalar_lea.vmem %s263, %s323
        %v325 = vld [vmem:[%s324] ss:$2 sm:$0xff]
        %s326 = scalar_lea.vmem %s324, 48
        %v327 = vld [vmem:[%s326] ss:$2 sm:$0xff]
        %s328 = scalar_lea.vmem %s324, 96
        %v329 = vld [vmem:[%s328] ss:$2 sm:$0xff]
        %s330 = scalar_lea.vmem %s324, 144
        %v331 = vld [vmem:[%s330] ss:$2 sm:$0xff]
        %v332 = vperm.slane %v267, 0
        %v333 = vmul.f32 %v325, %v332
        %v334 = vmul.f32 %v327, %v332
        %v335 = vmul.f32 %v329, %v332
        %v336 = vmul.f32 %v331, %v332
        %v337 = vadd.f32 %v318, %v333
        %v338 = vadd.f32 %v319, %v334
        %v339 = vadd.f32 %v320, %v335
        %v340 = vadd.f32 %v321, %v336
        %s341 = scalar_lea.vmem %s324, 1
        %v342 = vld [vmem:[%s341] ss:$2 sm:$0xff]
        %s343 = scalar_lea.vmem %s324, 49
        %v344 = vld [vmem:[%s343] ss:$2 sm:$0xff]
        %s345 = scalar_lea.vmem %s324, 97
        %v346 = vld [vmem:[%s345] ss:$2 sm:$0xff]
        %s347 = scalar_lea.vmem %s324, 145
        %v348 = vld [vmem:[%s347] ss:$2 sm:$0xff]
        %v349 = vperm.slane %v267, 1
        %v350 = vmul.f32 %v342, %v349
        %v351 = vmul.f32 %v344, %v349
        %v352 = vmul.f32 %v346, %v349
        %v353 = vmul.f32 %v348, %v349
        %v354 = vadd.f32 %v337, %v350
        %v355 = vadd.f32 %v338, %v351
        %v356 = vadd.f32 %v339, %v352
        %v357 = vadd.f32 %v340, %v353
        %s358 = scalar_lea.vmem %s324, 2
        %v359 = vld [vmem:[%s358] ss:$2 sm:$0xff]
        %s360 = scalar_lea.vmem %s324, 50
        %v361 = vld [vmem:[%s360] ss:$2 sm:$0xff]
        %s362 = scalar_lea.vmem %s324, 98
        %v363 = vld [vmem:[%s362] ss:$2 sm:$0xff]
        %s364 = scalar_lea.vmem %s324, 146
        %v365 = vld [vmem:[%s364] ss:$2 sm:$0xff]
        %v366 = vperm.slane %v267, 2
        %v367 = vmul.f32 %v359, %v366
        %v368 = vmul.f32 %v361, %v366
        %v369 = vmul.f32 %v363, %v366
        %v370 = vmul.f32 %v365, %v366
        %v371 = vadd.f32 %v354, %v367
        %v372 = vadd.f32 %v355, %v368
        %v373 = vadd.f32 %v356, %v369
        %v374 = vadd.f32 %v357, %v370
        %s375 = sadd.s32 %s265, 2
        %s376 = smul.u32 %s375, 24
        %s377 = scalar_lea.vmem %s263, %s376
        %v378 = vld [vmem:[%s377] ss:$2 sm:$0xff]
        %s379 = scalar_lea.vmem %s377, 48
        %v380 = vld [vmem:[%s379] ss:$2 sm:$0xff]
        %s381 = scalar_lea.vmem %s377, 96
        %v382 = vld [vmem:[%s381] ss:$2 sm:$0xff]
        %s383 = scalar_lea.vmem %s377, 144
        %v384 = vld [vmem:[%s383] ss:$2 sm:$0xff]
        %v385 = vperm.slane %v268, 0
        %v386 = vmul.f32 %v378, %v385
        %v387 = vmul.f32 %v380, %v385
        %v388 = vmul.f32 %v382, %v385
        %v389 = vmul.f32 %v384, %v385
        %v390 = vadd.f32 %v371, %v386
        %v391 = vadd.f32 %v372, %v387
        %v392 = vadd.f32 %v373, %v388
        %v393 = vadd.f32 %v374, %v389
        %s394 = scalar_lea.vmem %s377, 1
        %v395 = vld [vmem:[%s394] ss:$2 sm:$0xff]
        %s396 = scalar_lea.vmem %s377, 49
        %v397 = vld [vmem:[%s396] ss:$2 sm:$0xff]
        %s398 = scalar_lea.vmem %s377, 97
        %v399 = vld [vmem:[%s398] ss:$2 sm:$0xff]
        %s400 = scalar_lea.vmem %s377, 145
        %v401 = vld [vmem:[%s400] ss:$2 sm:$0xff]
        %v402 = vperm.slane %v268, 1
        %v403 = vmul.f32 %v395, %v402
        %v404 = vmul.f32 %v397, %v402
        %v405 = vmul.f32 %v399, %v402
        %v406 = vmul.f32 %v401, %v402
        %v407 = vadd.f32 %v390, %v403
        %v408 = vadd.f32 %v391, %v404
        %v409 = vadd.f32 %v392, %v405
        %v410 = vadd.f32 %v393, %v406
        %s411 = scalar_lea.vmem %s377, 2
        %v412 = vld [vmem:[%s411] ss:$2 sm:$0xff]
        %s413 = scalar_lea.vmem %s377, 50
        %v414 = vld [vmem:[%s413] ss:$2 sm:$0xff]
        %s415 = scalar_lea.vmem %s377, 98
        %v416 = vld [vmem:[%s415] ss:$2 sm:$0xff]
        %s417 = scalar_lea.vmem %s377, 146
        %v418 = vld [vmem:[%s417] ss:$2 sm:$0xff]
        %v419 = vperm.slane %v268, 2
        %v420 = vmul.f32 %v412, %v419
        %v421 = vmul.f32 %v414, %v419
        %v422 = vmul.f32 %v416, %v419
        %v423 = vmul.f32 %v418, %v419
        %v424 = vadd.f32 %v407, %v420
        %v425 = vadd.f32 %v408, %v421
        %v426 = vadd.f32 %v409, %v422
        %v427 = vadd.f32 %v410, %v423
        %v429 = vperm.slane %v269, 0
        %v431 = vadd.f32 %v424, %v429
        %v432 = vadd.f32 %v425, %v429
        %v433 = vadd.f32 %v426, %v429
        %v434 = vadd.f32 %v427, %v429
        %v435 = vmax.f32 %v431, 0.0
        %v436 = vmax.f32 %v432, 0.0
        %v437 = vmax.f32 %v433, 0.0
        %v438 = vmax.f32 %v434, 0.0
        %v439 = vld [vmem:[%s3] sm:$0xf]
        %vm440 = vcmask 31744
        %v442 = vsel %vm440, %v435, 0
        %v445 = vsel %vm440, %v436, 0
        %v448 = vsel %vm440, %v437, 0
        %v451 = vsel %vm440, %v438, 0
        %vm453 = vcmask 1043456
        %v455 = vsel %vm453, %v439, 0
        %457 = vmatpush.msra.mxu0 0.0
        %458 = vmatpush.msra.mxu0 0.0
        %459 = vmatpush.msra.mxu0 0.0
        %460 = vmatpush.msra.mxu0 0.0
        %461 = vmatpush.msra.mxu0 0.0
        %462 = vmatpush.msra.mxu0 0.0
        %463 = vmatpush.msra.mxu0 0.0
        %464 = vmatpush.msra.mxu0 0.0
        %465 = vmatpush.msra.mxu0 0.0
        %466 = vmatpush.msra.mxu0 0.0
        %467 = vmatpush.msra.mxu0 0.0
        %468 = vmatpush.msra.mxu0 0.0
        %469 = vmatpush.msra.mxu0 0.0
        %470 = vmatpush.msra.mxu0 0.0
        %471 = vmatpush.msra.mxu0 0.0
        %472 = vmatpush.msra.mxu0 %v455
        %473 = vmatmul.f32.gmra.mxu0 %v442
        %v474 = vpop.f32.mrf.mxu0
        %v475 = vadd.f32 0.0, %v474
        %476 = vmatmul.f32.gmra.mxu0 %v445
        %v477 = vpop.f32.mrf.mxu0
        %v478 = vadd.f32 0.0, %v477
        %479 = vmatmul.f32.gmra.mxu0 %v448
        %v480 = vpop.f32.mrf.mxu0
        %v481 = vadd.f32 0.0, %v480
        %482 = vmatmul.f32.gmra.mxu0 %v451
        %v483 = vpop.f32.mrf.mxu0
        %v484 = vadd.f32 0.0, %v483
        %485 = vdwg.mxu0
        %v486 = vld [vmem:[%s4] sm:$0x1]
        %v488 = vperm.slane %v486, 0
        %v490 = vmul.f32 %v475, %v488
        %v491 = vmul.f32 %v478, %v488
        %v492 = vmul.f32 %v481, %v488
        %v493 = vmul.f32 %v484, %v488
        %v494 = vld [vmem:[%s5] sm:$0x1]
        %v496 = vperm.slane %v494, 0
        %v498 = vadd.f32 %v490, %v496
        %v499 = vadd.f32 %v491, %v496
        %v500 = vadd.f32 %v492, %v496
        %v501 = vadd.f32 %v493, %v496
        %v502 = vmax.f32 %v498, 0.0
        %v503 = vmax.f32 %v499, 0.0
        %v504 = vmax.f32 %v500, 0.0
        %v505 = vmax.f32 %v501, 0.0
        %vm506 = vcmask 64512
        %507 = vst.msk [vmem:[%s258] sm:$0xff] %vm506, %v502
        %508 = vst.msk [vmem:[%s258 + $0x8] sm:$0xff] %vm506, %v503
        %509 = vst.msk [vmem:[%s258 + $0x10] sm:$0xff] %vm506, %v504
        %510 = vst.msk [vmem:[%s258 + $0x18] sm:$0xff] %vm506, %v505
        %s511 = sand.u32 %s173, 1
        %s512 = scalar_lea.sflag [#allocation3], %s511
        %s513 = sand.u32 %s173, 1
        %s514 = smul.addr %s513, 32
        %s515 = scalar_lea.vmem [#allocation2], %s514
        // Predicated region
        $region45: #{tpu_custom_call.1} parent=43 // pred_check
          %p516 = pneg %p183
        $region46: #{tpu_custom_call.1} parent=43 // pred_check_branch
          %518 = sbr.rel (%p516) target = $region48
        $region47: #{tpu_custom_call.1} parent=43 // pred_region
          %s519 = smul.u32 4, %s25
          %521 = vsyncadd %s512, 0
          %s522 = smul.addr %s24, 8
          %s523 = sadd.s32 %s519, %s522
          %s524 = smul.addr %s523, 8
          %s525 = scalar_lea.hbm %s6, %s524
          %s526 = sshll.u32 %s515, 4
          %s527 = int_to_ptr.vmem [resolvable:$true] %s526
          %s528 = sshll.u32 %s525, 4
          %s529 = int_to_ptr.hbm [resolvable:$true] %s528
          %534 = dma.vmem_to_hbm [thread:$0]  %s527, 512, %s529, %s512, 128, 128, 8
        $region48: #{tpu_custom_call.1} parent=43 // pred_fallthru
          _
      $region44: #{tpu_custom_call.1} parent=5 // pred_fallthru
        _
      %p535 = scmp.le.s32.totalorder 2, %s15
      // Predicated region
      $region49: #{tpu_custom_call.1} parent=5 // pred_check
        %p536 = pneg %p535
      $region50: #{tpu_custom_call.1} parent=5 // pred_check_branch
        %538 = sbr.rel (%p536) target = $region52
      $region51: #{tpu_custom_call.1} parent=5 // pred_region
        %s539 = ssub.s32 %s15, 2
        // Predicated region
        $region53: #{tpu_custom_call.1} parent=51 // pred_check
          %p540 = pneg %p189
        $region54: #{tpu_custom_call.1} parent=51 // pred_check_branch
          %542 = sbr.rel (%p540) target = $region56
        $region55: #{tpu_custom_call.1} parent=51 // pred_region
          %s543 = sand.u32 %s174, 1
          %s544 = scalar_lea.sflag [#allocation3], %s543
          %s545 = sand.u32 %s174, 1
          %s546 = smul.addr %s545, 32
          %s547 = scalar_lea.vmem [#allocation2], %s546
          %549 = dma.done %s544, 512
        $region56: #{tpu_custom_call.1} parent=51 // pred_fallthru
          _
      $region52: #{tpu_custom_call.1} parent=5 // pred_fallthru
        _
    $region6: #{tpu_custom_call.1} parent=1 // loop_footer
      %s19 = sadd.s32 1, %s15
    $region7: #{tpu_custom_call.1} parent=1 // loop_footer_branch
      %14 = sbr.rel target = $region3
    $region8: #{tpu_custom_call.1} parent=1 // loop_exit
      _
    %550 = vsyncpa [#allocation3], 1
    %s551 = scalar_lea.sflag [#allocation3], 1
    %552 = vsyncpa %s551, 1

</llo_original>
